<compile_context>
chip_gen: v6e
topology: v6e:2x2x1
jax: 0.10.0
libtpu: 0.0.40
codegen_flags: <defaults>
</compile_context>

<pallas_src>
import math
import jax
import jax.numpy as jnp
from jax.experimental import pallas as pl
from jax.experimental.pallas import tpu as pltpu


def _round_up(x: int, m: int) -> int:
    return ((x + m - 1) // m) * m


def _proj_kernel_single_k(x_ref, w_ref, o_ref):
    """Single K block: MXU result goes straight to the output tile."""
    o_ref[...] = jnp.dot(
        x_ref[...], w_ref[...], preferred_element_type=jnp.float32
    ).astype(o_ref.dtype)


def _proj_kernel_acc(x_ref, w_ref, o_ref, acc_ref):
    """Tiled matmul with f32 accumulation across the (last, arbitrary) K axis."""
    k = pl.program_id(2)

    @pl.when(k == 0)
    def _():
        acc_ref[...] = jnp.zeros_like(acc_ref)

    acc_ref[...] += jnp.dot(
        x_ref[...], w_ref[...], preferred_element_type=jnp.float32
    )

    @pl.when(k == pl.num_programs(2) - 1)
    def _():
        o_ref[...] = acc_ref[...].astype(o_ref.dtype)


def projection_sequence_forward(x, weight, *, tile_m=256, tile_n=256, tile_k=None):
    """x: (..., out_features), weight: (out_features, in_features).

    Returns x @ weight with shape (..., in_features).
    """
    out_features, in_features = weight.shape
    assert x.shape[-1] == out_features, "input last dim must equal out_features"

    lead_shape = x.shape[:-1]
    M = int(math.prod(lead_shape)) if lead_shape else 1
    K = out_features
    N = in_features

    x2d = x.reshape(M, K)
    itemsize = jnp.dtype(x.dtype).itemsize

    # Sublane packing granularity: 8 for 32-bit, 16 for bf16, 32 for 8-bit.
    sub = max(8, 32 // max(1, itemsize))

    # --- tile selection (padded, lane/sublane aligned) -----------------------
    tm = min(int(tile_m), _round_up(M, sub))
    tm = _round_up(tm, sub)
    Mp = _round_up(M, tm)

    tn = min(int(tile_n), _round_up(N, 128))
    tn = _round_up(tn, 128)
    Np = _round_up(N, tn)

    if tile_k is None:
        tile_k = K if K <= 2048 else 512
    if tile_k >= K:
        tk = K                      # K untiled: full (possibly non-128) K is fine
        Kp = K
    else:
        tk = _round_up(int(tile_k), 128)
        Kp = _round_up(K, tk)
        if tk >= Kp:                # rounding collapsed it to a single block
            tk = Kp
    k_steps = Kp // tk

    # --- zero-pad operands (zeros contribute nothing to the dot) -------------
    if Mp != M or Kp != K:
        x2d = jnp.pad(x2d, ((0, Mp - M), (0, Kp - K)))
    w = weight
    if Kp != K or Np != N:
        w = jnp.pad(w, ((0, Kp - K), (0, Np - N)))

    cost = pl.CostEstimate(
        flops=2 * Mp * Np * Kp,
        transcendentals=0,
        bytes_accessed=(Mp * Kp + Kp * Np + Mp * Np) * itemsize,
    )

    if k_steps == 1:
        out2d = pl.pallas_call(
            _proj_kernel_single_k,
            out_shape=jax.ShapeDtypeStruct((Mp, Np), x.dtype),
            grid_spec=pltpu.PrefetchScalarGridSpec(
                num_scalar_prefetch=0,
                grid=(Mp // tm, Np // tn),
                in_specs=[
                    pl.BlockSpec((tm, Kp), lambda i, j: (i, 0)),   # x row panel
                    pl.BlockSpec((Kp, tn), lambda i, j: (0, j)),   # weight col panel
                ],
                out_specs=pl.BlockSpec((tm, tn), lambda i, j: (i, j)),
            ),
            compiler_params=pltpu.CompilerParams(
                dimension_semantics=("parallel", "parallel"),
            ),
            cost_estimate=cost,
        )(x2d, w)
    else:
        out2d = pl.pallas_call(
            _proj_kernel_acc,
            out_shape=jax.ShapeDtypeStruct((Mp, Np), x.dtype),
            grid_spec=pltpu.PrefetchScalarGridSpec(
                num_scalar_prefetch=0,
                grid=(Mp // tm, Np // tn, k_steps),
                in_specs=[
                    pl.BlockSpec((tm, tk), lambda i, j, k: (i, k)),
                    pl.BlockSpec((tk, tn), lambda i, j, k: (k, j)),
                ],
                out_specs=pl.BlockSpec((tm, tn), lambda i, j, k: (i, j)),
                scratch_shapes=[pltpu.VMEM((tm, tn), jnp.float32)],
            ),
            compiler_params=pltpu.CompilerParams(
                dimension_semantics=("parallel", "parallel", "arbitrary"),
            ),
            cost_estimate=cost,
        )(x2d, w)

    out2d = out2d[:M, :N]
    return out2d.reshape(*lead_shape, N)


def init_projection_weight(key, in_features, out_features, dtype=jnp.float32):
    """Matches reset_parameters(): normal(mean=0, std=1/sqrt(out_features)),
    stored with shape (out_features, in_features)."""
    std = 1.0 / math.sqrt(out_features)
    return std * jax.random.normal(key, (out_features, in_features), dtype=dtype)


if __name__ == "__main__":
    key = jax.random.PRNGKey(0)
    k_w, k_x, k_w2, k_x2 = jax.random.split(key, 4)

    # --- case 1: small shapes implied by the module (single-K kernel path) ---
    in_features, out_features = 32, 64
    batch, seq = 2, 8
    weight = init_projection_weight(k_w, in_features, out_features)
    x = jax.random.normal(k_x, (batch, seq, out_features), dtype=jnp.float32)

    out = projection_sequence_forward(x, weight)
    out = jax.block_until_ready(out)
    ref = x @ weight
    assert out.shape == (batch, seq, in_features)
    assert jnp.allclose(out, ref, atol=1e-5, rtol=1e-5)

    # --- case 2: exercise the accumulated (tiled-K) kernel path --------------
    in2, out2 = 48, 256
    weight2 = init_projection_weight(k_w2, in2, out2)
    x2 = jax.random.normal(k_x2, (batch, seq, out2), dtype=jnp.float32)

    o2 = projection_sequence_forward(x2, weight2, tile_k=128)
    o2 = jax.block_until_ready(o2)
    ref2 = x2 @ weight2
    assert o2.shape == (batch, seq, in2)
    assert jnp.allclose(o2, ref2, atol=1e-4, rtol=1e-4)

    print("KERNEL_OK")
</pallas_src>

<mosaic_0001>
module attributes {stable_mosaic.version = 11 : i64} {
  func.func @_proj_kernel_single_k(%arg0: i32, %arg1: i32, %arg2: memref<16x64xf32, #tpu.memory_space<vmem>>, %arg3: memref<64x128xf32, #tpu.memory_space<vmem>>, %arg4: memref<16x128xf32, #tpu.memory_space<vmem>>) attributes {dimension_semantics = [#tpu.dimension_semantics<parallel>, #tpu.dimension_semantics<parallel>], iteration_bounds = array<i64: 1, 1>, scalar_prefetch = 0 : i64, scratch_operands = 0 : i64, tpu.core_type = #tpu.core_type<tc>, window_params = [{transform_indices = @transform_0, window_bounds = array<i64: 16, 64>}, {transform_indices = @transform_1, window_bounds = array<i64: 64, 128>}, {transform_indices = @transform_2, window_bounds = array<i64: 16, 128>}]} {
    %c0 = arith.constant 0 : index
    %c0_0 = arith.constant 0 : index
    %0 = vector.load %arg2[%c0, %c0_0] : memref<16x64xf32, #tpu.memory_space<vmem>>, vector<16x64xf32>
    %c0_1 = arith.constant 0 : index
    %c0_2 = arith.constant 0 : index
    %1 = vector.load %arg3[%c0_1, %c0_2] : memref<64x128xf32, #tpu.memory_space<vmem>>, vector<64x128xf32>
    %cst = arith.constant dense<0.000000e+00> : vector<16x128xf32>
    %2 = tpu.matmul %0, %1, %cst {dimension_numbers = #tpu.dot_dimension_numbers<[1], [0], [0], [1], [0, 0, 1, 1], [], []>} : vector<16x64xf32>, vector<64x128xf32>, vector<16x128xf32> -> vector<16x128xf32>
    %c0_3 = arith.constant 0 : index
    %c0_4 = arith.constant 0 : index
    %3 = vector.load %arg4[%c0_3, %c0_4] : memref<16x128xf32, #tpu.memory_space<vmem>>, vector<16x128xf32>
    tpu.vector_store %arg4[%c0_3, %c0_4], %2 {strides = array<i32>} : memref<16x128xf32, #tpu.memory_space<vmem>>, vector<16x128xf32>,
    return
  }
  func.func @transform_0(%arg0: i32, %arg1: i32) -> (i32, i32) {
    %c0_i32 = arith.constant 0 : i32
    %c0_i32_0 = arith.constant 0 : i32
    return %arg0, %c0_i32 : i32, i32
  }
  func.func @transform_1(%arg0: i32, %arg1: i32) -> (i32, i32) {
    %c0_i32 = arith.constant 0 : i32
    %c0_i32_0 = arith.constant 0 : i32
    return %c0_i32, %arg1 : i32, i32
  }
  func.func @transform_2(%arg0: i32, %arg1: i32) -> (i32, i32) {
    %c0_i32 = arith.constant 0 : i32
    return %arg0, %arg1 : i32, i32
  }
}

</mosaic_0001>

<llo_original>
// kernel: tpu_custom_call.1
$region0: #{tpu_custom_call.1}
  #allocation0 [shape = 'u32[]', space=smem, size = 0x4, offset = 0x4, fixed_abs, tag = 'smem constant byte address 0x4 - core index']
  #allocation1 [shape = 'u32[144,128]{1,0:T(1,128)}', space=vmem, size = 0x12000, scoped, tag = 'internal scratch']
  %s0 = inlined_call_operand.hbm [shape: f32[16,64], index: 0, kind: input, shape index: {}]
  %s1 = inlined_call_operand.hbm [shape: f32[64,128], index: 1, kind: input, shape index: {}]
  %s2 = inlined_call_operand.hbm [shape: f32[16,128], index: 2, kind: output, shape index: {}]
  %s3 = sld [smem:[#allocation0]]
  $region26: #{tpu_custom_call.1} parent=0
    _
  %s5 = ssub.s32 1, %s3
  %s6 = scalar_select 0, %s5, %s3
  $region1: #{tpu_custom_call.1} parent=0
    #allocation2 [shape = 'u8[8192]{0}', space=vmem, size = 0x2000, scoped, tag = 'input window, operand 0, single buffered']
    #allocation3 [shape = 's32[1]{0}', space=sflag, size = 0x4, scoped, tag = 'scoped memory for tpu_custom_call.1']
    #allocation4 [shape = 's32[1]{0}', space=sflag, size = 0x4, scoped, tag = 'scoped memory for tpu_custom_call.1']
    #allocation5 [shape = 'u8[32768]{0}', space=vmem, size = 0x8000, scoped, tag = 'input window, operand 1, single buffered']
    #allocation6 [shape = 's32[1]{0}', space=sflag, size = 0x4, scoped, tag = 'scoped memory for tpu_custom_call.1']
    #allocation7 [shape = 'u8[8192]{0}', space=vmem, size = 0x2000, scoped, tag = 'output window, operand 0, single buffered']
    %7 = vsyncpa [#allocation3], 0
    %8 = vsyncpa [#allocation6], 0
    %9 = vsyncpa [#allocation4], 0
    // Predicated region
    $region2: #{tpu_custom_call.1} parent=1 // pred_check
      _
    $region3: #{tpu_custom_call.1} parent=1 // pred_check_branch
      %11 = sbr.rel (0) target = $region5
    $region4: #{tpu_custom_call.1} parent=1 // pred_region
      %s13 = ssub.s32 256, 256
      %14 = vsyncadd [#allocation3], %s13
      %s15 = sshll.u32 [#allocation2], 4
      %s16 = int_to_ptr.vmem [resolvable:$true] %s15
      %21 = dma.hbm_to_vmem [thread:$0]  %s0, 256, %s16, [#allocation3], 128, 128, 8
    $region5: #{tpu_custom_call.1} parent=1 // pred_fallthru
      _
    // Predicated region
    $region6: #{tpu_custom_call.1} parent=1 // pred_check
      _
    $region7: #{tpu_custom_call.1} parent=1 // pred_check_branch
      %23 = sbr.rel (0) target = $region9
    $region8: #{tpu_custom_call.1} parent=1 // pred_region
      %s25 = ssub.s32 1024, 1024
      %26 = vsyncadd [#allocation6], %s25
      %s27 = sshll.u32 [#allocation5], 4
      %s28 = int_to_ptr.vmem [resolvable:$true] %s27
      %33 = dma.hbm_to_vmem [thread:$0]  %s1, 1024, %s28, [#allocation6], 128, 128, 8
    $region9: #{tpu_custom_call.1} parent=1 // pred_fallthru
      _
    // Predicated region
    $region10: #{tpu_custom_call.1} parent=1 // pred_check
      _
    $region11: #{tpu_custom_call.1} parent=1 // pred_check_branch
      %35 = sbr.rel (0) target = $region13
    $region12: #{tpu_custom_call.1} parent=1 // pred_region
      %36 = dma.done [#allocation3], 256
    $region13: #{tpu_custom_call.1} parent=1 // pred_fallthru
      _
    // Predicated region
    $region14: #{tpu_custom_call.1} parent=1 // pred_check
      _
    $region15: #{tpu_custom_call.1} parent=1 // pred_check_branch
      %38 = sbr.rel (0) target = $region17
    $region16: #{tpu_custom_call.1} parent=1 // pred_region
      %39 = dma.done [#allocation6], 1024
    $region17: #{tpu_custom_call.1} parent=1 // pred_fallthru
      _
    %v40 = vld [vmem:[#allocation2] sm:$0xff]
    %v41 = vld [vmem:[#allocation2 + $0x8] sm:$0xff]
    %v42 = vld [vmem:[#allocation5] sm:$0xff]
    %v43 = vld [vmem:[#allocation5 + $0x8] sm:$0xff]
    %v44 = vld [vmem:[#allocation5 + $0x10] sm:$0xff]
    %v45 = vld [vmem:[#allocation5 + $0x18] sm:$0xff]
    %v46 = vld [vmem:[#allocation5 + $0x20] sm:$0xff]
    %v47 = vld [vmem:[#allocation5 + $0x28] sm:$0xff]
    %v48 = vld [vmem:[#allocation5 + $0x30] sm:$0xff]
    %v49 = vld [vmem:[#allocation5 + $0x38] sm:$0xff]
    %vm50 = vcmask 523264
    %v52 = vsel %vm50, %v40, 0
    %v55 = vsel %vm50, %v41, 0
    %57 = vmatprep.subr.mxu0 0.0
    %58 = vmatpush1.msra.mxu0 0.0
    %59 = vmatprep.subr.mxu0 0.0
    %60 = vmatpush1.msra.mxu0 0.0
    %61 = vmatprep.subr.mxu0 0.0
    %62 = vmatpush1.msra.mxu0 0.0
    %63 = vmatprep.subr.mxu0 0.0
    %64 = vmatpush1.msra.mxu0 0.0
    %65 = vmatprep.subr.mxu0 0.0
    %66 = vmatpush1.msra.mxu0 0.0
    %67 = vmatprep.subr.mxu0 0.0
    %68 = vmatpush1.msra.mxu0 0.0
    %69 = vmatprep.subr.mxu0 0.0
    %70 = vmatpush1.msra.mxu0 0.0
    %71 = vmatprep.subr.mxu0 0.0
    %72 = vmatpush1.msra.mxu0 0.0
    %73 = vmatprep.subr.mxu0 0.0
    %74 = vmatpush1.msra.mxu0 %v49
    %75 = vmatprep.subr.mxu0 0.0
    %76 = vmatpush1.msra.mxu0 %v48
    %77 = vmatprep.subr.mxu0 0.0
    %78 = vmatpush1.msra.mxu0 %v47
    %79 = vmatprep.subr.mxu0 0.0
    %80 = vmatpush1.msra.mxu0 %v46
    %81 = vmatprep.subr.mxu0 0.0
    %82 = vmatpush1.msra.mxu0 %v45
    %83 = vmatprep.subr.mxu0 0.0
    %84 = vmatpush1.msra.mxu0 %v44
    %85 = vmatprep.subr.mxu0 0.0
    %86 = vmatpush1.msra.mxu0 %v43
    %87 = vmatprep.subr.mxu0 0.0
    %88 = vmatpush1.msra.mxu0 %v42
    %89 = vmatprep.subr.mxu0 0.0
    %90 = vmatpush2.msra.mxu0 0.0
    %91 = vmatprep.subr.mxu0 0.0
    %92 = vmatpush2.msra.mxu0 0.0
    %93 = vmatprep.subr.mxu0 0.0
    %94 = vmatpush2.msra.mxu0 0.0
    %95 = vmatprep.subr.mxu0 0.0
    %96 = vmatpush2.msra.mxu0 0.0
    %97 = vmatprep.subr.mxu0 0.0
    %98 = vmatpush2.msra.mxu0 0.0
    %99 = vmatprep.subr.mxu0 0.0
    %100 = vmatpush2.msra.mxu0 0.0
    %101 = vmatprep.subr.mxu0 0.0
    %102 = vmatpush2.msra.mxu0 0.0
    %103 = vmatprep.subr.mxu0 0.0
    %104 = vmatpush2.msra.mxu0 0.0
    %105 = vmatprep.subr.mxu0 0.0
    %106 = vmatpush2.msra.mxu0 0.0
    %107 = vmatprep.subr.mxu0 0.0
    %108 = vmatpush2.msra.mxu0 0.0
    %109 = vmatprep.subr.mxu0 0.0
    %110 = vmatpush2.msra.mxu0 0.0
    %111 = vmatprep.subr.mxu0 0.0
    %112 = vmatpush2.msra.mxu0 0.0
    %113 = vmatprep.subr.mxu0 0.0
    %114 = vmatpush2.msra.mxu0 0.0
    %115 = vmatprep.subr.mxu0 0.0
    %116 = vmatpush2.msra.mxu0 0.0
    %117 = vmatprep.subr.mxu0 0.0
    %118 = vmatpush2.msra.mxu0 0.0
    %119 = vmatprep.subr.mxu0 0.0
    %120 = vmatpush2.msra.mxu0 0.0
    %121 = vmatprep.mubr.f32.mxu0 0.0
    %122 = vmatmul.mubr.f32.gmra.mxu0 %v52
    %v123 = vpop.f32.mrf.mxu0
    %v124 = vadd.f32 0.0, %v123
    %v125 = vpop.f32.mrf.mxu0
    %126 = vmatprep.mubr.f32.mxu0 0.0
    %127 = vmatmul.mubr.f32.gmra.mxu0 %v55
    %v128 = vpop.f32.mrf.mxu0
    %v129 = vadd.f32 0.0, %v128
    %v130 = vpop.f32.mrf.mxu0
    %131 = vdwg.mxu0
    %132 = vst [vmem:[#allocation7] sm:$0xff] %v124
    %133 = vst [vmem:[#allocation7 + $0x8] sm:$0xff] %v129
    // Predicated region
    $region18: #{tpu_custom_call.1} parent=1 // pred_check
      _
    $region19: #{tpu_custom_call.1} parent=1 // pred_check_branch
      %135 = sbr.rel (0) target = $region21
    $region20: #{tpu_custom_call.1} parent=1 // pred_region
      %s137 = ssub.s32 256, 256
      %138 = vsyncadd [#allocation4], %s137
      %s139 = sshll.u32 [#allocation7], 4
      %s140 = int_to_ptr.vmem [resolvable:$true] %s139
      %145 = dma.vmem_to_hbm [thread:$0]  %s140, 256, %s2, [#allocation4], 128, 128, 8
    $region21: #{tpu_custom_call.1} parent=1 // pred_fallthru
      _
    // Predicated region
    $region22: #{tpu_custom_call.1} parent=1 // pred_check
      _
    $region23: #{tpu_custom_call.1} parent=1 // pred_check_branch
      %147 = sbr.rel (0) target = $region25
    $region24: #{tpu_custom_call.1} parent=1 // pred_region
      %148 = dma.done [#allocation4], 256
    $region25: #{tpu_custom_call.1} parent=1 // pred_fallthru
      _
    %149 = vsyncpa [#allocation3], 1
    %150 = vsyncpa [#allocation6], 1
    %151 = vsyncpa [#allocation4], 1

</llo_original>
